<compile_context>
chip_gen: v5e
topology: v5e:2x2
jax: 0.10.0
libtpu: 0.0.40
codegen_flags: <defaults>
</compile_context>

<pallas_src>
import jax
import jax.numpy as jnp
from jax import lax
from jax.experimental import pallas as pl
from jax.experimental.pallas import tpu as pltpu

LN_EPS = 1e-5  # nn.LayerNorm default eps
_MIB = 1024 * 1024


def _round_up(x, m):
    return ((x + m - 1) // m) * m


def _cdiv(a, b):
    return -(-a // b)


def _vmem_capacity_bytes():
    try:
        info = pltpu.get_tpu_info()
        cap = getattr(info, "vmem_capacity_bytes", None)
        if cap:
            return int(cap)
    except Exception:
        pass
    return 64 * _MIB  # conservative default (v7x per-TensorCore VMEM)


def _make_kernel(out_dim, n_k, use_scratch):
    inv_n = 1.0 / float(out_dim)

    def epilogue(acc, b_ref, g_ref, beta_ref, o_ref):
        # Padded lanes of the weight/bias are exactly zero, so after ReLU the
        # padded lanes of y are zero too -> one-pass stats over out_pad are
        # exact over the true out_dim (no lane mask, single reduction pass each).
        y = jnp.maximum(acc + b_ref[...], 0.0)           # bias + ReLU (f32)
        s1 = jnp.sum(y, axis=-1, keepdims=True)
        s2 = jnp.sum(y * y, axis=-1, keepdims=True)
        mean = s1 * inv_n
        var = jnp.maximum(s2 * inv_n - mean * mean, 0.0)
        y_hat = (y - mean) * lax.rsqrt(var + LN_EPS)
        o_ref[...] = (y_hat * g_ref[...] + beta_ref[...]).astype(o_ref.dtype)

    if n_k == 1:
        # Whole K in one block: fused matmul + epilogue, no accumulator/branches.
        def kernel(x_ref, w_ref, b_ref, g_ref, beta_ref, o_ref):
            acc = jnp.dot(x_ref[...], w_ref[...],
                          preferred_element_type=jnp.float32)
            epilogue(acc, b_ref, g_ref, beta_ref, o_ref)
        return kernel

    def accumulate(x_ref, w_ref, acc_ref):
        @pl.when(pl.program_id(1) == 0)
        def _():
            acc_ref[...] = jnp.zeros_like(acc_ref)
        acc_ref[...] += jnp.dot(x_ref[...], w_ref[...],
                                preferred_element_type=jnp.float32)

    if use_scratch:
        # Non-f32 output dtype: keep a f32 VMEM scratch accumulator.
        def kernel(x_ref, w_ref, b_ref, g_ref, beta_ref, o_ref, acc_ref):
            accumulate(x_ref, w_ref, acc_ref)

            @pl.when(pl.program_id(1) == pl.num_programs(1) - 1)
            def _():
                epilogue(acc_ref[...], b_ref, g_ref, beta_ref, o_ref)
        return kernel

    # f32 output: accumulate directly into the resident output block
    # (saves tm*out_pad*4 B of VMEM -> headroom on v7x's 64 MiB per TC).
    def kernel(x_ref, w_ref, b_ref, g_ref, beta_ref, o_ref):
        accumulate(x_ref, w_ref, o_ref)

        @pl.when(pl.program_id(1) == pl.num_programs(1) - 1)
        def _():
            epilogue(o_ref[...], b_ref, g_ref, beta_ref, o_ref)
    return kernel


def linear_layer_forward(src, weight_t, bias, gamma, beta, *,
                         max_tm=1024, max_tk=2048, matmul_dtype=None):
    """y = LayerNorm(ReLU(src @ weight_t + bias)) * gamma + beta.

    src:      (..., in_dim)
    weight_t: (in_dim, out_dim)   (transposed vs. PyTorch nn.Linear.weight)
    bias, gamma, beta: (out_dim,)
    matmul_dtype: optional MXU operand dtype (e.g. jnp.bfloat16); output keeps
                  src.dtype and accumulation stays f32.
    """
    in_dim = src.shape[-1]
    out_dim = weight_t.shape[-1]
    lead_shape = src.shape[:-1]
    out_dtype = src.dtype

    x2d = src.reshape(-1, in_dim)
    w = weight_t
    if matmul_dtype is not None:
        x2d = x2d.astype(matmul_dtype)
        w = w.astype(matmul_dtype)
    M = x2d.shape[0]

    x_bytes = x2d.dtype.itemsize
    w_bytes = w.dtype.itemsize
    o_bytes = out_dtype.itemsize
    sub = max(8, 32 // x_bytes)        # dtype sublane multiple: f32 8, bf16 16

    out_pad = _round_up(out_dim, 128)  # lane-dense output stores

    # ---- budget-aware tile selection (per-generation VMEM) ----
    vmem_cap = _vmem_capacity_bytes()
    budget = int(vmem_cap * 0.6)       # ceiling for our explicit buffers

    use_scratch_if_tiled = out_dtype != jnp.float32

    def footprint(tm_, tk_):
        tiled = tk_ < in_dim
        f = 2 * tm_ * tk_ * x_bytes           # activation (double-buffered)
        f += 2 * tk_ * out_pad * w_bytes      # weight (double-buffered)
        f += 2 * tm_ * out_pad * o_bytes      # output (double-buffered)
        f += 6 * out_pad * 4                  # bias / gamma / beta (f32)
        if tiled and use_scratch_if_tiled:
            f += tm_ * out_pad * 4            # f32 scratch accumulator
        return f

    # K tile: whole K in one block when it fits, else a large multiple of 128;
    # keep the weight double-buffer within ~40% of the budget.
    tk = in_dim if in_dim <= max_tk else _round_up(min(max_tk, in_dim), 128)
    while 2 * tk * out_pad * w_bytes > 0.4 * budget and tk > 128:
        tk = max(128, _round_up(tk // 2, 128))

    # Row tile: as large as the budget allows, but split into >=2 row tiles so
    # both TensorCores on v7x can be fed (harmless on 1-TC v5e/v6e).
    if M <= sub:
        tm = M
    else:
        tm = max(sub, min(_round_up(max_tm, sub), _round_up(_cdiv(M, 2), sub)))
    while footprint(tm, tk) > budget and tm > sub:
        tm = max(sub, _round_up(tm // 2, sub))
    while footprint(tm, tk) > budget and tk > 128:
        tk = max(128, _round_up(tk // 2, 128))

    if tk >= in_dim:
        tk, n_k, k_pad = in_dim, 1, in_dim
    else:
        n_k = _cdiv(in_dim, tk)
        k_pad = n_k * tk

    # ---- padding (no row padding: ragged row tiles use partial blocks) ----
    if k_pad != in_dim:
        # ragged last K tile: zero-pad so garbage never enters the dot.
        x2d = jnp.pad(x2d, ((0, 0), (0, k_pad - in_dim)))
    pad_o = out_pad - out_dim
    if (k_pad, out_pad) != (in_dim, out_dim):
        w = jnp.pad(w, ((0, k_pad - in_dim), (0, pad_o)))
    b2d = jnp.pad(bias.astype(jnp.float32), (0, pad_o)).reshape(1, out_pad)
    g2d = jnp.pad(gamma.astype(jnp.float32), (0, pad_o)).reshape(1, out_pad)
    beta2d = jnp.pad(beta.astype(jnp.float32), (0, pad_o)).reshape(1, out_pad)

    use_scratch = (n_k > 1) and use_scratch_if_tiled
    kernel = _make_kernel(out_dim, n_k, use_scratch)
    scratch_shapes = [pltpu.VMEM((tm, out_pad), jnp.float32)] if use_scratch else []

    fp = footprint(tm, tk)
    vmem_limit = int(min(0.9 * vmem_cap, max(fp + 12 * _MIB, 32 * _MIB)))

    out2d = pl.pallas_call(
        kernel,
        out_shape=jax.ShapeDtypeStruct((M, out_pad), out_dtype),
        grid_spec=pltpu.PrefetchScalarGridSpec(
            num_scalar_prefetch=0,
            grid=(_cdiv(M, tm), n_k),
            in_specs=[
                pl.BlockSpec((tm, tk), lambda i, k: (i, k)),
                pl.BlockSpec((tk, out_pad), lambda i, k: (k, 0)),
                pl.BlockSpec((1, out_pad), lambda i, k: (0, 0)),
                pl.BlockSpec((1, out_pad), lambda i, k: (0, 0)),
                pl.BlockSpec((1, out_pad), lambda i, k: (0, 0)),
            ],
            out_specs=pl.BlockSpec((tm, out_pad), lambda i, k: (i, 0)),
            scratch_shapes=scratch_shapes,
        ),
        compiler_params=pltpu.CompilerParams(
            dimension_semantics=("parallel", "arbitrary"),
            vmem_limit_bytes=vmem_limit,
        ),
    )(x2d, w, b2d, g2d, beta2d)

    if out_pad != out_dim:
        out2d = out2d[:, :out_dim]
    return out2d.reshape(*lead_shape, out_dim)


def _reference(src, weight_t, bias, gamma, beta):
    y = jnp.maximum(src @ weight_t + bias, 0.0)
    mean = jnp.mean(y, axis=-1, keepdims=True)
    var = jnp.mean((y - mean) ** 2, axis=-1, keepdims=True)
    return (y - mean) / jnp.sqrt(var + LN_EPS) * gamma + beta


if __name__ == "__main__":
    # ---- Test 1: demo shapes; out_dim=64 -> lane padding, ragged row tile,
    #              single K block, fused (no-accumulator) kernel. ----
    batch, seq, in_dim, out_dim = 2, 9, 32, 64
    k_src, k_w, k_b = jax.random.split(jax.random.PRNGKey(0), 3)
    src = jax.random.normal(k_src, (batch, seq, in_dim), dtype=jnp.float32)
    bound = 1.0 / (in_dim ** 0.5)
    weight_t = jax.random.uniform(k_w, (in_dim, out_dim), jnp.float32, -bound, bound)
    bias = jax.random.uniform(k_b, (out_dim,), jnp.float32, -bound, bound)
    gamma = jnp.ones((out_dim,), jnp.float32)   # LayerNorm weight init
    beta = jnp.zeros((out_dim,), jnp.float32)   # LayerNorm bias init

    out = linear_layer_forward(src, weight_t, bias, gamma, beta)
    jax.block_until_ready(out)
    ref = _reference(src, weight_t, bias, gamma, beta)
    assert out.shape == (batch, seq, out_dim)
    assert jnp.allclose(out, ref, atol=2e-3, rtol=2e-3), "test1 mismatch"

    # ---- Test 2: in_dim=640, max_tk=256 -> K-tiled path, accumulation held in
    #              the resident f32 output block, ragged K tile zero-padded. ----
    batch2, seq2, in_dim2, out_dim2 = 2, 8, 640, 256
    k_src2, k_w2, k_b2 = jax.random.split(jax.random.PRNGKey(1), 3)
    src2 = jax.random.normal(k_src2, (batch2, seq2, in_dim2), dtype=jnp.float32)
    bound2 = 1.0 / (in_dim2 ** 0.5)
    weight_t2 = jax.random.uniform(k_w2, (in_dim2, out_dim2), jnp.float32, -bound2, bound2)
    bias2 = jax.random.uniform(k_b2, (out_dim2,), jnp.float32, -bound2, bound2)
    gamma2 = jnp.ones((out_dim2,), jnp.float32)
    beta2 = jnp.zeros((out_dim2,), jnp.float32)

    out2 = linear_layer_forward(src2, weight_t2, bias2, gamma2, beta2, max_tk=256)
    jax.block_until_ready(out2)
    ref2 = _reference(src2, weight_t2, bias2, gamma2, beta2)
    assert out2.shape == (batch2, seq2, out_dim2)
    assert jnp.allclose(out2, ref2, atol=1e-2, rtol=1e-2), "test2 mismatch"

    # ---- Test 3: bf16 MXU operands (f32 in/out), same data as test 2. ----
    out3 = linear_layer_forward(src2, weight_t2, bias2, gamma2, beta2,
                                max_tk=256, matmul_dtype=jnp.bfloat16)
    jax.block_until_ready(out3)
    ref3 = _reference(src2.astype(jnp.bfloat16).astype(jnp.float32),
                      weight_t2.astype(jnp.bfloat16).astype(jnp.float32),
                      bias2, gamma2, beta2)
    assert jnp.allclose(out3, ref3, atol=5e-2, rtol=5e-2), "test3 mismatch"

    # ---- Test 4: end-to-end bf16 -> tiled K with f32 scratch accumulator. ----
    batch4, seq4, in_dim4, out_dim4 = 2, 8, 384, 128
    k_src4, k_w4, k_b4 = jax.random.split(jax.random.PRNGKey(2), 3)
    bound4 = 1.0 / (in_dim4 ** 0.5)
    src4 = jax.random.normal(k_src4, (batch4, seq4, in_dim4), jnp.float32).astype(jnp.bfloat16)
    weight_t4 = jax.random.uniform(k_w4, (in_dim4, out_dim4), jnp.float32,
                                   -bound4, bound4).astype(jnp.bfloat16)
    bias4 = jax.random.uniform(k_b4, (out_dim4,), jnp.float32,
                               -bound4, bound4).astype(jnp.bfloat16)
    gamma4 = jnp.ones((out_dim4,), jnp.bfloat16)
    beta4 = jnp.zeros((out_dim4,), jnp.bfloat16)

    out4 = linear_layer_forward(src4, weight_t4, bias4, gamma4, beta4, max_tk=128)
    jax.block_until_ready(out4)
    ref4 = _reference(src4.astype(jnp.float32), weight_t4.astype(jnp.float32),
                      bias4.astype(jnp.float32), gamma4.astype(jnp.float32),
                      beta4.astype(jnp.float32))
    assert out4.shape == (batch4, seq4, out_dim4)
    assert jnp.allclose(out4.astype(jnp.float32), ref4, atol=5e-2, rtol=5e-2), "test4 mismatch"

    print("KERNEL_OK")
</pallas_src>

<mosaic_0001>
module attributes {stable_mosaic.version = 11 : i64} {
  func.func @kernel(%arg0: i32, %arg1: i32, %arg2: memref<16x32xf32, #tpu.memory_space<vmem>>, %arg3: memref<32x128xf32, #tpu.memory_space<vmem>>, %arg4: memref<1x128xf32, #tpu.memory_space<vmem>>, %arg5: memref<1x128xf32, #tpu.memory_space<vmem>>, %arg6: memref<1x128xf32, #tpu.memory_space<vmem>>, %arg7: memref<16x128xf32, #tpu.memory_space<vmem>>) attributes {dimension_semantics = [#tpu.dimension_semantics<parallel>, #tpu.dimension_semantics<arbitrary>], iteration_bounds = array<i64: 2, 1>, scalar_prefetch = 0 : i64, scratch_operands = 0 : i64, tpu.core_type = #tpu.core_type<tc>, window_params = [{transform_indices = @transform_0, window_bounds = array<i64: 16, 32>}, {transform_indices = @transform_1, window_bounds = array<i64: 32, 128>}, {pipeline_mode = #tpu.pipeline_mode<synchronous>, transform_indices = @transform_2, window_bounds = array<i64: 1, 128>}, {pipeline_mode = #tpu.pipeline_mode<synchronous>, transform_indices = @transform_3, window_bounds = array<i64: 1, 128>}, {pipeline_mode = #tpu.pipeline_mode<synchronous>, transform_indices = @transform_4, window_bounds = array<i64: 1, 128>}, {transform_indices = @transform_5, window_bounds = array<i64: 16, 128>}]} {
    %c0 = arith.constant 0 : index
    %c0_0 = arith.constant 0 : index
    %0 = vector.load %arg2[%c0, %c0_0] : memref<16x32xf32, #tpu.memory_space<vmem>>, vector<16x32xf32>
    %c0_1 = arith.constant 0 : index
    %c0_2 = arith.constant 0 : index
    %1 = vector.load %arg3[%c0_1, %c0_2] : memref<32x128xf32, #tpu.memory_space<vmem>>, vector<32x128xf32>
    %cst = arith.constant dense<0.000000e+00> : vector<16x128xf32>
    %2 = tpu.matmul %0, %1, %cst {dimension_numbers = #tpu.dot_dimension_numbers<[1], [0], [0], [1], [0, 0, 1, 1], [], []>} : vector<16x32xf32>, vector<32x128xf32>, vector<16x128xf32> -> vector<16x128xf32>
    %c0_3 = arith.constant 0 : index
    %c0_4 = arith.constant 0 : index
    %3 = vector.load %arg4[%c0_3, %c0_4] : memref<1x128xf32, #tpu.memory_space<vmem>>, vector<1x128xf32>
    %4 = vector.broadcast %3 : vector<1x128xf32> to vector<16x128xf32>
    %5 = arith.addf %2, %4 : vector<16x128xf32>
    %cst_5 = arith.constant 0.000000e+00 : f32
    %6 = vector.broadcast %cst_5 : f32 to vector<16x128xf32>
    %7 = arith.maximumf %5, %6 : vector<16x128xf32>
    %cst_6 = arith.constant dense<0.000000e+00> : vector<16xf32>
    %8 = vector.multi_reduction <add>, %7, %cst_6 [1] : vector<16x128xf32> to vector<16xf32>
    %9 = vector.shape_cast %8 : vector<16xf32> to vector<16x1xf32>
    %10 = arith.mulf %7, %7 : vector<16x128xf32>
    %cst_7 = arith.constant dense<0.000000e+00> : vector<16xf32>
    %11 = vector.multi_reduction <add>, %10, %cst_7 [1] : vector<16x128xf32> to vector<16xf32>
    %12 = vector.shape_cast %11 : vector<16xf32> to vector<16x1xf32>
    %cst_8 = arith.constant 1.562500e-02 : f32
    %13 = vector.broadcast %cst_8 : f32 to vector<16x1xf32>
    %14 = arith.mulf %9, %13 : vector<16x1xf32>
    %cst_9 = arith.constant 1.562500e-02 : f32
    %15 = vector.broadcast %cst_9 : f32 to vector<16x1xf32>
    %16 = arith.mulf %12, %15 : vector<16x1xf32>
    %17 = arith.mulf %14, %14 : vector<16x1xf32>
    %18 = arith.subf %16, %17 : vector<16x1xf32>
    %cst_10 = arith.constant 0.000000e+00 : f32
    %19 = vector.broadcast %cst_10 : f32 to vector<16x1xf32>
    %20 = arith.maximumf %18, %19 : vector<16x1xf32>
    %21 = vector.broadcast %14 : vector<16x1xf32> to vector<16x128xf32>
    %22 = arith.subf %7, %21 : vector<16x128xf32>
    %cst_11 = arith.constant 9.99999974E-6 : f32
    %23 = vector.broadcast %cst_11 : f32 to vector<16x1xf32>
    %24 = arith.addf %20, %23 : vector<16x1xf32>
    %25 = math.rsqrt %24 : vector<16x1xf32>
    %26 = vector.broadcast %25 : vector<16x1xf32> to vector<16x128xf32>
    %27 = arith.mulf %22, %26 : vector<16x128xf32>
    %c0_12 = arith.constant 0 : index
    %c0_13 = arith.constant 0 : index
    %28 = vector.load %arg5[%c0_12, %c0_13] : memref<1x128xf32, #tpu.memory_space<vmem>>, vector<1x128xf32>
    %29 = vector.broadcast %28 : vector<1x128xf32> to vector<16x128xf32>
    %30 = arith.mulf %27, %29 : vector<16x128xf32>
    %c0_14 = arith.constant 0 : index
    %c0_15 = arith.constant 0 : index
    %31 = vector.load %arg6[%c0_14, %c0_15] : memref<1x128xf32, #tpu.memory_space<vmem>>, vector<1x128xf32>
    %32 = vector.broadcast %31 : vector<1x128xf32> to vector<16x128xf32>
    %33 = arith.addf %30, %32 : vector<16x128xf32>
    %c0_16 = arith.constant 0 : index
    %c0_17 = arith.constant 0 : index
    %34 = vector.load %arg7[%c0_16, %c0_17] : memref<16x128xf32, #tpu.memory_space<vmem>>, vector<16x128xf32>
    tpu.vector_store %arg7[%c0_16, %c0_17], %33 {strides = array<i32>} : memref<16x128xf32, #tpu.memory_space<vmem>>, vector<16x128xf32>,
    return
  }
  func.func @transform_0(%arg0: i32, %arg1: i32) -> (i32, i32) {
    %c0_i32 = arith.constant 0 : i32
    return %arg0, %arg1 : i32, i32
  }
  func.func @transform_1(%arg0: i32, %arg1: i32) -> (i32, i32) {
    %c0_i32 = arith.constant 0 : i32
    %c0_i32_0 = arith.constant 0 : i32
    return %arg1, %c0_i32 : i32, i32
  }
  func.func @transform_2(%arg0: i32, %arg1: i32) -> (i32, i32) {
    %c0_i32 = arith.constant 0 : i32
    %c0_i32_0 = arith.constant 0 : i32
    %c0_i32_1 = arith.constant 0 : i32
    return %c0_i32, %c0_i32_0 : i32, i32
  }
  func.func @transform_3(%arg0: i32, %arg1: i32) -> (i32, i32) {
    %c0_i32 = arith.constant 0 : i32
    %c0_i32_0 = arith.constant 0 : i32
    %c0_i32_1 = arith.constant 0 : i32
    return %c0_i32, %c0_i32_0 : i32, i32
  }
  func.func @transform_4(%arg0: i32, %arg1: i32) -> (i32, i32) {
    %c0_i32 = arith.constant 0 : i32
    %c0_i32_0 = arith.constant 0 : i32
    %c0_i32_1 = arith.constant 0 : i32
    return %c0_i32, %c0_i32_0 : i32, i32
  }
  func.func @transform_5(%arg0: i32, %arg1: i32) -> (i32, i32) {
    %c0_i32 = arith.constant 0 : i32
    %c0_i32_0 = arith.constant 0 : i32
    return %arg0, %c0_i32 : i32, i32
  }
}

</mosaic_0001>

<llo_original>
// kernel: tpu_custom_call.1
$region0: #{tpu_custom_call.1}
  #allocation0 [shape = 'u32[]', space=smem, size = 0x4, offset = 0x4, fixed_abs, tag = 'smem constant byte address 0x4 - core index']
  #allocation1 [shape = 'u32[72,128]{1,0:T(1,128)}', space=vmem, size = 0x9000, scoped, tag = 'internal scratch']
  %s0 = inlined_call_operand.hbm [shape: f32[18,32], index: 0, kind: input, shape index: {}]
  %s1 = inlined_call_operand.hbm [shape: f32[32,128], index: 1, kind: input, shape index: {}]
  %s2 = inlined_call_operand.vmem [shape: f32[1,128], index: 2, kind: input, shape index: {}]
  %s3 = inlined_call_operand.vmem [shape: f32[1,128], index: 3, kind: input, shape index: {}]
  %s4 = inlined_call_operand.vmem [shape: f32[1,128], index: 4, kind: input, shape index: {}]
  %s5 = inlined_call_operand.hbm [shape: f32[18,128], index: 5, kind: output, shape index: {}]
  %s6 = sld [smem:[#allocation0]]
  $region61: #{tpu_custom_call.1} parent=0
    _
  %s8 = ssub.s32 1, %s6
  %s9 = scalar_select 0, %s8, %s6
  $region1: #{tpu_custom_call.1} parent=0
    #allocation2 [shape = 'u8[16384]{0}', space=vmem, size = 0x4000, scoped, tag = 'input window, operand 0']
    #allocation3 [shape = 's32[2]{0}', space=sflag, size = 0x8, scoped, tag = 'scoped memory for tpu_custom_call.1']
    #allocation4 [shape = 's32[2]{0}', space=sflag, size = 0x8, scoped, tag = 'scoped memory for tpu_custom_call.1']
    #allocation5 [shape = 'u8[16384]{0}', space=vmem, size = 0x4000, scoped, tag = 'input window, operand 1, single buffered']
    #allocation6 [shape = 's32[1]{0}', space=sflag, size = 0x4, scoped, tag = 'scoped memory for tpu_custom_call.1']
    #allocation7 [shape = 'u8[16384]{0}', space=vmem, size = 0x4000, scoped, tag = 'output window, operand 0']
    %10 = vsyncpa [#allocation3], 0
    %s11 = scalar_lea.sflag [#allocation3], 1
    %12 = vsyncpa %s11, 0
    %13 = vsyncpa [#allocation6], 0
    %14 = vsyncpa [#allocation4], 0
    %s15 = scalar_lea.sflag [#allocation4], 1
    %16 = vsyncpa %s15, 0
    loop: start=0, step=1, limit=4
    $region2: #{tpu_custom_call.1} parent=1 // loop_pre_header
      _
    $region3: #{tpu_custom_call.1} parent=1 // loop_header
      %s18 = sphi 0, %s22
      %p19 = scmp.ge.s32.totalorder %s18, 4
      %s25 = sphi 0, %s37
      %s26 = sphi 0, %s33
      %s27 = sphi 0, %s25
      %s28 = sphi 0, %s26
      %s29 = sphi 0, %s27
      %s30 = sphi 0, %s28
      %s42 = sphi 0, %s44
      %s45 = sphi 0, %s42
      %s46 = sphi 0, %s45
      %s62 = sphi 0, %s46
      %s68 = sphi 0, %s70
      %s71 = sphi 0, %s68
      %s72 = sphi 0, %s71
      %s88 = sphi 0, %s72
      %s92 = sphi 0, %s92
      %s94 = sphi 0, %s92
      %s95 = sphi 0, %s94
      %s109 = sphi 0, %s95
      %s113 = sphi 0, %s113
      %s115 = sphi 0, %s113
      %s116 = sphi 0, %s115
      %s130 = sphi 0, %s116
      %s134 = sphi 0, %s134
      %s136 = sphi 0, %s134
      %s137 = sphi 0, %s136
      %s151 = sphi 0, %s137
      %s157 = sphi 0, %s159
      %s160 = sphi 0, %s157
      %s161 = sphi 0, %s160
      %s177 = sphi 0, %s161
    $region4: #{tpu_custom_call.1} parent=1 // loop_header_branch
      %21 = sbr.rel (%p19) target = $region8
    $region5: #{tpu_custom_call.1} parent=1 // loop_body
      %s23 = ssub.s32 %s18, 1
      %s24 = ssub.s32 %s18, 2
      %s31 = sadd.s32 1, %s26
      %p32 = scmp.ge.s32.totalorder %s31, 1
      %s33 = scalar_select %p32, 0, %s31
      %s34 = sadd.s32 1, %s25
      %s35 = scalar_select %p32, %s34, %s25
      %p36 = scmp.ge.s32.totalorder %s35, 2
      %s37 = scalar_select %p36, 0, %s35
      %s38 = ssub.s32 %s25, %s37
      %s39 = ssub.s32 %s26, %s33
      %s40 = sor.u32 %s38, %s39
      %p41 = scmp.eq.s32.totalorder %s40, 0
      %s43 = sadd.s32 %s42, 1
      %s44 = scalar_select %p41, %s42, %s43
      %p47 = pneg %p41
      %p48 = scmp.eq.s32.totalorder %s18, 1
      %p49 = por %p47, %p48
      %p50 = scmp.ne.s32.totalorder %s42, %s45
      %p51 = scmp.eq.s32.totalorder %s18, 0
      %p52 = por %p50, %p51
      %p53 = scmp.ne.s32.totalorder %s42, %s45
      %p54 = scmp.eq.s32.totalorder %s23, 1
      %p55 = por %p53, %p54
      %p56 = scmp.ne.s32.totalorder %s45, %s46
      %p57 = scmp.eq.s32.totalorder %s23, 0
      %p58 = por %p56, %p57
      %p59 = scmp.ne.s32.totalorder %s45, %s46
      %p60 = scmp.eq.s32.totalorder %s24, 1
      %p61 = por %p59, %p60
      %p63 = scmp.ne.s32.totalorder %s46, %s62
      %p64 = scmp.eq.s32.totalorder %s24, 0
      %p65 = por %p63, %p64
      %s66 = ssub.s32 %s26, %s33
      %p67 = scmp.eq.s32.totalorder %s66, 0
      %s69 = sadd.s32 %s68, 1
      %s70 = scalar_select %p67, %s68, %s69
      %p73 = pneg %p67
      %p74 = scmp.eq.s32.totalorder %s18, 1
      %p75 = por %p73, %p74
      %p76 = scmp.ne.s32.totalorder %s68, %s71
      %p77 = scmp.eq.s32.totalorder %s18, 0
      %p78 = por %p76, %p77
      %p79 = scmp.ne.s32.totalorder %s68, %s71
      %p80 = scmp.eq.s32.totalorder %s23, 1
      %p81 = por %p79, %p80
      %p82 = scmp.ne.s32.totalorder %s71, %s72
      %p83 = scmp.eq.s32.totalorder %s23, 0
      %p84 = por %p82, %p83
      %p85 = scmp.ne.s32.totalorder %s71, %s72
      %p86 = scmp.eq.s32.totalorder %s24, 1
      %p87 = por %p85, %p86
      %p89 = scmp.ne.s32.totalorder %s72, %s88
      %p90 = scmp.eq.s32.totalorder %s24, 0
      %p91 = por %p89, %p90
      %s93 = sadd.s32 %s92, 1
      %p96 = scmp.eq.s32.totalorder %s18, 1
      %p97 = scmp.ne.s32.totalorder %s92, %s94
      %p98 = scmp.eq.s32.totalorder %s18, 0
      %p99 = por %p97, %p98
      %p100 = scmp.ne.s32.totalorder %s92, %s94
      %p101 = scmp.eq.s32.totalorder %s23, 1
      %p102 = por %p100, %p101
      %p103 = scmp.ne.s32.totalorder %s94, %s95
      %p104 = scmp.eq.s32.totalorder %s23, 0
      %p105 = por %p103, %p104
      %p106 = scmp.ne.s32.totalorder %s94, %s95
      %p107 = scmp.eq.s32.totalorder %s24, 1
      %p108 = por %p106, %p107
      %p110 = scmp.ne.s32.totalorder %s95, %s109
      %p111 = scmp.eq.s32.totalorder %s24, 0
      %p112 = por %p110, %p111
      %s114 = sadd.s32 %s113, 1
      %p117 = scmp.eq.s32.totalorder %s18, 1
      %p118 = scmp.ne.s32.totalorder %s113, %s115
      %p119 = scmp.eq.s32.totalorder %s18, 0
      %p120 = por %p118, %p119
      %p121 = scmp.ne.s32.totalorder %s113, %s115
      %p122 = scmp.eq.s32.totalorder %s23, 1
      %p123 = por %p121, %p122
      %p124 = scmp.ne.s32.totalorder %s115, %s116
      %p125 = scmp.eq.s32.totalorder %s23, 0
      %p126 = por %p124, %p125
      %p127 = scmp.ne.s32.totalorder %s115, %s116
      %p128 = scmp.eq.s32.totalorder %s24, 1
      %p129 = por %p127, %p128
      %p131 = scmp.ne.s32.totalorder %s116, %s130
      %p132 = scmp.eq.s32.totalorder %s24, 0
      %p133 = por %p131, %p132
      %s135 = sadd.s32 %s134, 1
      %p138 = scmp.eq.s32.totalorder %s18, 1
      %p139 = scmp.ne.s32.totalorder %s134, %s136
      %p140 = scmp.eq.s32.totalorder %s18, 0
      %p141 = por %p139, %p140
      %p142 = scmp.ne.s32.totalorder %s134, %s136
      %p143 = scmp.eq.s32.totalorder %s23, 1
      %p144 = por %p142, %p143
      %p145 = scmp.ne.s32.totalorder %s136, %s137
      %p146 = scmp.eq.s32.totalorder %s23, 0
      %p147 = por %p145, %p146
      %p148 = scmp.ne.s32.totalorder %s136, %s137
      %p149 = scmp.eq.s32.totalorder %s24, 1
      %p150 = por %p148, %p149
      %p152 = scmp.ne.s32.totalorder %s137, %s151
      %p153 = scmp.eq.s32.totalorder %s24, 0
      %p154 = por %p152, %p153
      %s155 = ssub.s32 %s25, %s37
      %p156 = scmp.eq.s32.totalorder %s155, 0
      %s158 = sadd.s32 %s157, 1
      %s159 = scalar_select %p156, %s157, %s158
      %p162 = pneg %p156
      %p163 = scmp.eq.s32.totalorder %s18, 1
      %p164 = por %p162, %p163
      %p165 = scmp.ne.s32.totalorder %s157, %s160
      %p166 = scmp.eq.s32.totalorder %s18, 0
      %p167 = por %p165, %p166
      %p168 = scmp.ne.s32.totalorder %s157, %s160
      %p169 = scmp.eq.s32.totalorder %s23, 1
      %p170 = por %p168, %p169
      %p171 = scmp.ne.s32.totalorder %s160, %s161
      %p172 = scmp.eq.s32.totalorder %s23, 0
      %p173 = por %p171, %p172
      %p174 = scmp.ne.s32.totalorder %s160, %s161
      %p175 = scmp.eq.s32.totalorder %s24, 1
      %p176 = por %p174, %p175
      %p178 = scmp.ne.s32.totalorder %s161, %s177
      %p179 = scmp.eq.s32.totalorder %s24, 0
      %p180 = por %p178, %p179
      %p181 = scmp.le.s32.totalorder 1, %s18
      %p182 = scmp.lt.s32.totalorder %s18, 3
      %p183 = pnand %p181, %p182
      %p184 = pneg %p183
      // Predicated region
      $region9: #{tpu_custom_call.1} parent=5 // pred_check
        _
      $region10: #{tpu_custom_call.1} parent=5 // pred_check_branch
        %186 = sbr.rel (%p183) target = $region12
      $region11: #{tpu_custom_call.1} parent=5 // pred_region
        %s187 = ssub.s32 %s18, 1
        // Predicated region
        $region13: #{tpu_custom_call.1} parent=11 // pred_check
          %p188 = pneg %p84
        $region14: #{tpu_custom_call.1} parent=11 // pred_check_branch
          %190 = sbr.rel (%p188) target = $region16
        $region15: #{tpu_custom_call.1} parent=11 // pred_region
          %s191 = smul.u32 4, %s28
          %193 = vsyncadd [#allocation6], 0
          %s194 = smul.addr %s191, 8
          %s195 = scalar_lea.hbm %s1, %s194
          %s196 = sshll.u32 %s195, 4
          %s197 = int_to_ptr.hbm [resolvable:$true] %s196
          %s198 = sshll.u32 [#allocation5], 4
          %s199 = int_to_ptr.vmem [resolvable:$true] %s198
          %204 = dma.hbm_to_vmem [thread:$0]  %s197, 512, %s199, [#allocation6], 128, 128, 8
        $region16: #{tpu_custom_call.1} parent=11 // pred_fallthru
          _
        // Predicated region
        $region17: #{tpu_custom_call.1} parent=11 // pred_check
          %p205 = pneg %p105
        $region18: #{tpu_custom_call.1} parent=11 // pred_check_branch
          %207 = sbr.rel (%p205) target = $region20
        $region19: #{tpu_custom_call.1} parent=11 // pred_region
          _
        $region20: #{tpu_custom_call.1} parent=11 // pred_fallthru
          _
        // Predicated region
        $region21: #{tpu_custom_call.1} parent=11 // pred_check
          %p208 = pneg %p126
        $region22: #{tpu_custom_call.1} parent=11 // pred_check_branch
          %210 = sbr.rel (%p208) target = $region24
        $region23: #{tpu_custom_call.1} parent=11 // pred_region
          _
        $region24: #{tpu_custom_call.1} parent=11 // pred_fallthru
          _
        // Predicated region
        $region25: #{tpu_custom_call.1} parent=11 // pred_check
          %p211 = pneg %p147
        $region26: #{tpu_custom_call.1} parent=11 // pred_check_branch
          %213 = sbr.rel (%p211) target = $region28
        $region27: #{tpu_custom_call.1} parent=11 // pred_region
          _
        $region28: #{tpu_custom_call.1} parent=11 // pred_fallthru
          _
      $region12: #{tpu_custom_call.1} parent=5 // pred_fallthru
        _
      %p214 = scmp.lt.s32.totalorder %s18, 2
      // Predicated region
      $region29: #{tpu_custom_call.1} parent=5 // pred_check
        %p215 = pneg %p214
      $region30: #{tpu_custom_call.1} parent=5 // pred_check_branch
        %217 = sbr.rel (%p215) target = $region32
      $region31: #{tpu_custom_call.1} parent=5 // pred_region
        // Predicated region
        $region33: #{tpu_custom_call.1} parent=31 // pred_check
          %p218 = pneg %p52
        $region34: #{tpu_custom_call.1} parent=31 // pred_check_branch
          %220 = sbr.rel (%p218) target = $region36
        $region35: #{tpu_custom_call.1} parent=31 // pred_region
          %s221 = sand.u32 %s42, 1
          %s222 = scalar_lea.sflag [#allocation3], %s221
          %s223 = sand.u32 %s42, 1
          %s224 = smul.addr %s223, 16
          %s225 = scalar_lea.vmem [#allocation2], %s224
          %s226 = smul.u32 2, %s25
          %s227 = ssub.s32 3, %s226
          %p228 = scmp.lt.s32.totalorder %s227, 2
          %s229 = scalar_select %p228, %s227, 2
          %s230 = smul.u32 8, %s229
          %s231 = ssub.s32 16, %s230
          %s232 = sshll.u32 %s231, 4
          %233 = vsyncadd %s222, %s232
          %p234 = scmp.ne.s32.totalorder 0, %s230
          %s235 = sadd.s32 %s26, %s226
          %s236 = smul.addr %s235, 8
          %s237 = scalar_lea.hbm %s0, %s236
          %s238 = smul.u32 8, %s229
          %s239 = sshll.u32 %s237, 4
          %s240 = int_to_ptr.hbm [resolvable:$true] %s239
          %s241 = sshll.u32 %s225, 4
          %s242 = int_to_ptr.vmem [resolvable:$true] %s241
          %s243 = sshll.u32 %s238, 4
          %247 = dma.hbm_to_vmem [thread:$0]  (%p234), %s240, %s243, %s242, %s222, 128, 128, 8
        $region36: #{tpu_custom_call.1} parent=31 // pred_fallthru
          _
      $region32: #{tpu_custom_call.1} parent=5 // pred_fallthru
        _
      %p248 = scmp.le.s32.totalorder 1, %s18
      %p249 = scmp.lt.s32.totalorder %s18, 3
      %p250 = pnand %p248, %p249
      %p251 = pneg %p250
      // Predicated region
      $region37: #{tpu_custom_call.1} parent=5 // pred_check
        _
      $region38: #{tpu_custom_call.1} parent=5 // pred_check_branch
        %253 = sbr.rel (%p250) target = $region40
      $region39: #{tpu_custom_call.1} parent=5 // pred_region
        %s254 = ssub.s32 %s18, 1
        %s255 = sand.u32 %s45, 1
        %s256 = scalar_lea.sflag [#allocation3], %s255
        %s257 = sand.u32 %s45, 1
        %s258 = smul.addr %s257, 16
        %s259 = scalar_lea.vmem [#allocation2], %s258
        // Predicated region
        $region41: #{tpu_custom_call.1} parent=39 // pred_check
          %p260 = pneg %p58
        $region42: #{tpu_custom_call.1} parent=39 // pred_check_branch
          %262 = sbr.rel (%p260) target = $region44
        $region43: #{tpu_custom_call.1} parent=39 // pred_region
          %264 = dma.done %s256, 256
        $region44: #{tpu_custom_call.1} parent=39 // pred_fallthru
          _
        // Predicated region
        $region45: #{tpu_custom_call.1} parent=39 // pred_check
          %p265 = pneg %p84
        $region46: #{tpu_custom_call.1} parent=39 // pred_check_branch
          %267 = sbr.rel (%p265) target = $region48
        $region47: #{tpu_custom_call.1} parent=39 // pred_region
          %269 = dma.done [#allocation6], 512
        $region48: #{tpu_custom_call.1} parent=39 // pred_fallthru
          _
        %s270 = sand.u32 %s45, 1
        %s271 = scalar_lea.sflag [#allocation3], %s270
        %s272 = sand.u32 %s45, 1
        %s273 = smul.addr %s272, 16
        %s274 = scalar_lea.vmem [#allocation2], %s273
        %p275 = pneg %p58
        %p276 = pneg %p55
        %p277 = pneg %p84
        %p278 = pneg %p81
        %p279 = pneg %p105
        %p280 = pneg %p102
        %p281 = pneg %p126
        %p282 = pneg %p123
        %p283 = pneg %p147
        %p284 = pneg %p144
        %p285 = pneg %p173
        %p286 = pneg %p170
        %s287 = sand.u32 %s160, 1
        %s288 = scalar_lea.sflag [#allocation4], %s287
        %s289 = sand.u32 %s160, 1
        %s290 = smul.addr %s289, 16
        %s291 = scalar_lea.vmem [#allocation7], %s290
        %s292 = smul.u32 2, %s27
        %s293 = ssub.s32 3, %s292
        %p294 = scmp.lt.s32.totalorder %s293, 2
        %s295 = scalar_select %p294, %s293, 2
        %s296 = smul.u32 8, %s295
        %s297 = smul.u32 4, %s28
        %s298 = smul.u32 2, %s27
        %s299 = ssub.s32 3, %s298
        %p300 = scmp.lt.s32.totalorder %s299, 2
        %s301 = scalar_select %p300, %s299, 2
        %s302 = smul.u32 8, %s301
        %v303 = vld [vmem:[%s259] sm:$0xff]
        %v304 = vld [vmem:[%s259 + $0x8] sm:$0xff]
        %v305 = vld [vmem:[#allocation5] sm:$0xff]
        %v306 = vld [vmem:[#allocation5 + $0x8] sm:$0xff]
        %v307 = vld [vmem:[#allocation5 + $0x10] sm:$0xff]
        %v308 = vld [vmem:[#allocation5 + $0x18] sm:$0xff]
        %v309 = vld [vmem:[%s2] sm:$0x1]
        %v311 = vperm.slane %v309, 0
        %vm313 = vcmask 261120
        %v315 = vsel %vm313, %v303, 0
        %v318 = vsel %vm313, %v304, 0
        %320 = vmatpush.msra.mxu0 0.0
        %321 = vmatpush.msra.mxu0 0.0
        %322 = vmatpush.msra.mxu0 0.0
        %323 = vmatpush.msra.mxu0 0.0
        %324 = vmatpush.msra.mxu0 0.0
        %325 = vmatpush.msra.mxu0 0.0
        %326 = vmatpush.msra.mxu0 0.0
        %327 = vmatpush.msra.mxu0 0.0
        %328 = vmatpush.msra.mxu0 0.0
        %329 = vmatpush.msra.mxu0 0.0
        %330 = vmatpush.msra.mxu0 0.0
        %331 = vmatpush.msra.mxu0 0.0
        %332 = vmatpush.msra.mxu0 %v308
        %333 = vmatpush.msra.mxu0 %v307
        %334 = vmatpush.msra.mxu0 %v306
        %335 = vmatpush.msra.mxu0 %v305
        %336 = vmatmul.f32.gmra.mxu0 %v315
        %v337 = vpop.f32.mrf.mxu0
        %v338 = vadd.f32 %v311, %v337
        %339 = vmatmul.f32.gmra.mxu0 %v318
        %v340 = vpop.f32.mrf.mxu0
        %v341 = vadd.f32 %v311, %v340
        %342 = vdwg.mxu0
        %v343 = vmax.f32 %v338, 0.0
        %v344 = vmax.f32 %v341, 0.0
        %345 = vadd.xlane.f32.xlu0 %v343
        %v346 = vpop.xlane.xlu0 %345
        %347 = vadd.xlane.f32.xlu0 %v344
        %v348 = vpop.xlane.xlu0 %347
        %v349 = vmul.f32 %v343, %v343
        %v350 = vmul.f32 %v344, %v344
        %351 = vadd.xlane.f32.xlu0 %v349
        %v352 = vpop.xlane.xlu0 %351
        %353 = vadd.xlane.f32.xlu0 %v350
        %v354 = vpop.xlane.xlu0 %353
        %v355 = vmul.f32 %v346, 0.015625
        %v356 = vmul.f32 %v348, 0.015625
        %v357 = vmul.f32 %v352, 0.015625
        %v358 = vmul.f32 %v354, 0.015625
        %v359 = vmul.f32 %v355, %v355
        %v360 = vmul.f32 %v356, %v356
        %v361 = vsub.f32 %v357, %v359
        %v362 = vsub.f32 %v358, %v360
        %v363 = vmax.f32 %v361, 0.0
        %v364 = vmax.f32 %v362, 0.0
        %v365 = vsub.f32 %v343, %v355
        %v366 = vsub.f32 %v344, %v356
        %v367 = vadd.f32 %v363, 1e-05
        %v368 = vadd.f32 %v364, 1e-05
        %v369 = vrsqrt.pop %v367
        %v370 = vmul.f32 %v369, %v367
        %v371 = vmul.f32 %v370, %v369
        %v372 = vmul.f32 0.5, %v371
        %v373 = vsub.f32 1.5, %v372
        %v374 = vmul.f32 %v369, %v373
        %vm375 = vweird.f32 %v367
        %vm376 = vweird.f32 %v369
        %vm377 = vmor %vm375, %vm376
        %v378 = vsel %vm377, %v369, %v374
        %v379 = vrsqrt.pop %v368
        %v380 = vmul.f32 %v379, %v368
        %v381 = vmul.f32 %v380, %v379
        %v382 = vmul.f32 0.5, %v381
        %v383 = vsub.f32 1.5, %v382
        %v384 = vmul.f32 %v379, %v383
        %vm385 = vweird.f32 %v368
        %vm386 = vweird.f32 %v379
        %vm387 = vmor %vm385, %vm386
        %v388 = vsel %vm387, %v379, %v384
        %v389 = vmul.f32 %v365, %v378
        %v390 = vmul.f32 %v366, %v388
        %v391 = vld [vmem:[%s3] sm:$0x1]
        %v393 = vperm.slane %v391, 0
        %v395 = vmul.f32 %v389, %v393
        %v396 = vmul.f32 %v390, %v393
        %v397 = vld [vmem:[%s4] sm:$0x1]
        %v399 = vperm.slane %v397, 0
        %v401 = vadd.f32 %v395, %v399
        %v402 = vadd.f32 %v396, %v399
        %403 = vst [vmem:[%s291] sm:$0xff] %v401
        %404 = vst [vmem:[%s291 + $0x8] sm:$0xff] %v402
        %s405 = sand.u32 %s160, 1
        %s406 = scalar_lea.sflag [#allocation4], %s405
        %s407 = sand.u32 %s160, 1
        %s408 = smul.addr %s407, 16
        %s409 = scalar_lea.vmem [#allocation7], %s408
        // Predicated region
        $region49: #{tpu_custom_call.1} parent=39 // pred_check
          %p410 = pneg %p170
        $region50: #{tpu_custom_call.1} parent=39 // pred_check_branch
          %412 = sbr.rel (%p410) target = $region52
        $region51: #{tpu_custom_call.1} parent=39 // pred_region
          %s413 = smul.u32 2, %s27
          %s414 = ssub.s32 3, %s413
          %p415 = scmp.lt.s32.totalorder %s414, 2
          %s416 = scalar_select %p415, %s414, 2
          %s417 = smul.u32 8, %s416
          %s418 = ssub.s32 16, %s417
          %s419 = sshll.u32 %s418, 4
          %420 = vsyncadd %s406, %s419
          %p421 = scmp.ne.s32.totalorder 0, %s417
          %s422 = smul.addr %s413, 8
          %s423 = scalar_lea.hbm %s5, %s422
          %s424 = smul.u32 8, %s416
          %s425 = sshll.u32 %s409, 4
          %s426 = int_to_ptr.vmem [resolvable:$true] %s425
          %s427 = sshll.u32 %s423, 4
          %s428 = int_to_ptr.hbm [resolvable:$true] %s427
          %s429 = sshll.u32 %s424, 4
          %433 = dma.vmem_to_hbm [thread:$0]  (%p421), %s426, %s429, %s428, %s406, 128, 128, 8
        $region52: #{tpu_custom_call.1} parent=39 // pred_fallthru
          _
      $region40: #{tpu_custom_call.1} parent=5 // pred_fallthru
        _
      %p434 = scmp.le.s32.totalorder 2, %s18
      // Predicated region
      $region53: #{tpu_custom_call.1} parent=5 // pred_check
        %p435 = pneg %p434
      $region54: #{tpu_custom_call.1} parent=5 // pred_check_branch
        %437 = sbr.rel (%p435) target = $region56
      $region55: #{tpu_custom_call.1} parent=5 // pred_region
        %s438 = ssub.s32 %s18, 2
        // Predicated region
        $region57: #{tpu_custom_call.1} parent=55 // pred_check
          %p439 = pneg %p176
        $region58: #{tpu_custom_call.1} parent=55 // pred_check_branch
          %441 = sbr.rel (%p439) target = $region60
        $region59: #{tpu_custom_call.1} parent=55 // pred_region
          %s442 = sand.u32 %s161, 1
          %s443 = scalar_lea.sflag [#allocation4], %s442
          %s444 = sand.u32 %s161, 1
          %s445 = smul.addr %s444, 16
          %s446 = scalar_lea.vmem [#allocation7], %s445
          %448 = dma.done %s443, 256
        $region60: #{tpu_custom_call.1} parent=55 // pred_fallthru
          _
      $region56: #{tpu_custom_call.1} parent=5 // pred_fallthru
        _
    $region6: #{tpu_custom_call.1} parent=1 // loop_footer
      %s22 = sadd.s32 1, %s18
    $region7: #{tpu_custom_call.1} parent=1 // loop_footer_branch
      %17 = sbr.rel target = $region3
    $region8: #{tpu_custom_call.1} parent=1 // loop_exit
      _
    %449 = vsyncpa [#allocation3], 1
    %s450 = scalar_lea.sflag [#allocation3], 1
    %451 = vsyncpa %s450, 1
    %452 = vsyncpa [#allocation6], 1
    %453 = vsyncpa [#allocation4], 1
    %s454 = scalar_lea.sflag [#allocation4], 1
    %455 = vsyncpa %s454, 1

</llo_original>
